<compile_context>
chip_gen: v5e
topology: v5e:2x2
jax: 0.10.0
libtpu: 0.0.40
codegen_flags: <defaults>
</compile_context>

<pallas_src>
import jax
import jax.numpy as jnp
import numpy as np
from jax import lax
from jax.experimental import pallas as pl
from jax.experimental.pallas import tpu as pltpu


_SMALL_PATH_MAX_BYTES = 2 * 1024 * 1024  # one-shot kernel if everything fits here


def _round_up(x, m):
    return ((x + m - 1) // m) * m


def _pad2d(a, rows, cols):
    r, c = a.shape
    if r == rows and c == cols:
        return a
    return jnp.pad(a, ((0, rows - r), (0, cols - c)))


def _padded_bytes(rows, cols, itemsize):
    # VMEM footprint estimate including Mosaic's internal (8,128) vreg padding.
    return _round_up(max(rows, 1), 8) * _round_up(max(cols, 1), 128) * itemsize


def _pick_tile(dim, unit, target):
    """Largest multiple of `unit` that divides `dim` (itself a multiple of
    `unit`) and is <= target. Keeps padding at the minimal alignment."""
    best = unit
    t = unit
    cap = min(target, dim)
    while t <= cap:
        if dim % t == 0:
            best = t
        t += unit
    return best


# ---------------------------------------------------------------------------
# Small-layer fast path: one fused kernel, full-array blocks, no padding.
# ---------------------------------------------------------------------------
def _small_kernel(x_ref, w_ref, m_ref, b_ref, o_ref):
    wm = w_ref[...] * m_ref[...].astype(w_ref.dtype)
    acc = lax.dot_general(x_ref[...], wm, (((1,), (1,)), ((), ())),
                          preferred_element_type=jnp.float32)
    o_ref[...] = (acc + b_ref[...]).astype(o_ref.dtype)


def _small_kernel_cond(x_ref, w_ref, m_ref, b_ref, cx_ref, cw_ref, o_ref):
    wm = w_ref[...] * m_ref[...].astype(w_ref.dtype)
    acc = lax.dot_general(x_ref[...], wm, (((1,), (1,)), ((), ())),
                          preferred_element_type=jnp.float32)
    acc += lax.dot_general(cx_ref[...], cw_ref[...], (((1,), (1,)), ((), ())),
                           preferred_element_type=jnp.float32)
    o_ref[...] = (acc + b_ref[...]).astype(o_ref.dtype)


def _small_masked_linear(x, w, m, b, cx, cw, out_dtype):
    M = x.shape[0]
    N = w.shape[0]
    b2 = b.reshape(1, N)
    if cx is not None:
        return pl.pallas_call(
            _small_kernel_cond,
            out_shape=jax.ShapeDtypeStruct((M, N), out_dtype),
        )(x, w, m, b2, cx, cw)
    return pl.pallas_call(
        _small_kernel,
        out_shape=jax.ShapeDtypeStruct((M, N), out_dtype),
    )(x, w, m, b2)


# ---------------------------------------------------------------------------
# Optional one-pass mask prepass (only when the matmul re-streams W many times).
# ---------------------------------------------------------------------------
def _mask_mul_kernel(w_ref, m_ref, o_ref):
    o_ref[...] = w_ref[...] * m_ref[...].astype(w_ref.dtype)


def _premask_weight(wp, mp, tr, tc):
    Np, Kp = wp.shape
    return pl.pallas_call(
        _mask_mul_kernel,
        out_shape=jax.ShapeDtypeStruct((Np, Kp), wp.dtype),
        grid=(Np // tr, Kp // tc),
        in_specs=[pl.BlockSpec((tr, tc), lambda i, j: (i, j)),
                  pl.BlockSpec((tr, tc), lambda i, j: (i, j))],
        out_specs=pl.BlockSpec((tr, tc), lambda i, j: (i, j)),
        compiler_params=pltpu.CompilerParams(
            dimension_semantics=("parallel", "parallel")),
    )(wp, mp)


# ---------------------------------------------------------------------------
# General tiled path: grid = (M/tm, N/tn, Kw/tk [+ Kc/tkc]).
# ---------------------------------------------------------------------------
def _make_tiled_kernel(fuse_mask, has_cond, use_acc, num_kw):
    """Argument order: x, w, [mask], bias, [cond_x, cond_w], out, [acc scratch].

    The first num_kw K steps accumulate x @ (w * mask)^T, the remaining steps
    accumulate cond_x @ cond_w^T (the cond matmul shares the same K reduction
    grid, no weight concat needed). Bias is applied exactly once.
    """

    def kernel(*refs):
        it = iter(refs)
        x_ref = next(it)
        w_ref = next(it)
        m_ref = next(it) if fuse_mask else None
        b_ref = next(it)
        cx_ref = next(it) if has_cond else None
        cw_ref = next(it) if has_cond else None
        o_ref = next(it)
        acc_ref = next(it) if use_acc else None

        k = pl.program_id(2)
        tgt = acc_ref if use_acc else o_ref

        @pl.when(k == 0)
        def _():
            if use_acc:
                tgt[...] = jnp.zeros_like(tgt)
            else:
                # f32 output accumulates in place: bias is the init value.
                tgt[...] = jnp.broadcast_to(b_ref[...], tgt.shape)

        def _main_step():
            w = w_ref[...]
            if fuse_mask:
                w = w * m_ref[...].astype(w.dtype)
            tgt[...] += lax.dot_general(
                x_ref[...], w, (((1,), (1,)), ((), ())),
                preferred_element_type=jnp.float32)

        if has_cond:
            pl.when(k < num_kw)(_main_step)

            @pl.when(k >= num_kw)
            def _():
                tgt[...] += lax.dot_general(
                    cx_ref[...], cw_ref[...], (((1,), (1,)), ((), ())),
                    preferred_element_type=jnp.float32)
        else:
            _main_step()

        if use_acc:
            @pl.when(k == pl.num_programs(2) - 1)
            def _():
                o_ref[...] = (acc_ref[...] + b_ref[...]).astype(o_ref.dtype)

    return kernel


def _tiled_masked_linear(x, w, m, b, cx, cw, out_dtype):
    M, Kw = x.shape
    N = w.shape[0]
    has_cond = cx is not None
    Kc = cx.shape[1] if has_cond else 0

    Mp = _round_up(M, 8)
    Np = _round_up(N, 128)
    Kwp = _round_up(Kw, 128)

    tm = _pick_tile(Mp, 8, 256)
    # Keep >= 2 blocks on the (parallel) N axis when N allows it so both v7x
    # TensorCores get work; cap at 512 for lane-dense, VMEM-friendly tiles.
    tn_target = Np if Np <= 256 else (256 if Np <= 1024 else 512)
    tn = _pick_tile(Np, 128, tn_target)
    tk = _pick_tile(Kwp, 128, 1024)

    num_i, num_j, num_kw = Mp // tm, Np // tn, Kwp // tk

    xp = _pad2d(x, Mp, Kwp)
    wp = _pad2d(w, Np, Kwp)
    mp = _pad2d(m, Np, Kwp)                 # native dtype; cast happens in-kernel
    bp = jnp.pad(b, (0, Np - N)).reshape(1, Np)

    if has_cond:
        Kcp = _round_up(Kc, 128)
        tkc = _pick_tile(Kcp, 128, 1024)
        num_kc = Kcp // tkc
        cxp = _pad2d(cx, Mp, Kcp)
        cwp = _pad2d(cw, Np, Kcp)
    else:
        num_kc = 0

    # With few batch tiles each weight tile is consumed once or twice: stream
    # raw weight + mask and multiply on the VPU inside the matmul (the step is
    # DMA/MXU bound, so the multiply is free and W only makes one HBM pass).
    # With many batch tiles, pre-multiply once so the matmul re-streams only W*M.
    fuse_mask = num_i < 4
    if not fuse_mask:
        wp = _premask_weight(wp, mp, tn, tk)

    direct = jnp.dtype(out_dtype) == jnp.dtype(jnp.float32)
    num_k = num_kw + num_kc

    if has_cond:
        x_map = lambda i, j, k: (i, jnp.minimum(k, num_kw - 1))
        w_map = lambda i, j, k: (j, jnp.minimum(k, num_kw - 1))
        cx_map = lambda i, j, k: (i, jnp.maximum(k - num_kw, 0))
        cw_map = lambda i, j, k: (j, jnp.maximum(k - num_kw, 0))
    else:
        x_map = lambda i, j, k: (i, k)
        w_map = lambda i, j, k: (j, k)

    in_specs = [pl.BlockSpec((tm, tk), x_map),
                pl.BlockSpec((tn, tk), w_map)]
    args = [xp, wp]
    if fuse_mask:
        in_specs.append(pl.BlockSpec((tn, tk), w_map))
        args.append(mp)
    in_specs.append(pl.BlockSpec((1, tn), lambda i, j, k: (0, j)))
    args.append(bp)
    if has_cond:
        in_specs += [pl.BlockSpec((tm, tkc), cx_map),
                     pl.BlockSpec((tn, tkc), cw_map)]
        args += [cxp, cwp]

    scratch = () if direct else (pltpu.VMEM((tm, tn), jnp.float32),)
    kernel = _make_tiled_kernel(fuse_mask, has_cond, not direct, num_kw)

    out = pl.pallas_call(
        kernel,
        out_shape=jax.ShapeDtypeStruct((Mp, Np), out_dtype),
        grid=(num_i, num_j, num_k),
        in_specs=in_specs,
        out_specs=pl.BlockSpec((tm, tn), lambda i, j, k: (i, j)),
        scratch_shapes=scratch,
        compiler_params=pltpu.CompilerParams(
            # Batch / out axes shard across v7x's two TensorCores; K stays the
            # resident-accumulator reduction axis.
            dimension_semantics=("parallel", "parallel", "arbitrary"),
            vmem_limit_bytes=32 * 1024 * 1024,
        ),
    )(*args)

    if Mp != M or Np != N:
        out = out[:M, :N]
    return out


# ---------------------------------------------------------------------------
# Public entry point (matches MaskedLinear.forward).
# ---------------------------------------------------------------------------
def masked_linear(inputs, weight, mask, bias=None, cond_inputs=None,
                  cond_weight=None):
    """Pallas TPU forward of MaskedLinear.

    inputs:       (..., in_features)
    weight, mask: (out_features, in_features)   (PyTorch nn.Linear layout)
    bias:         (out_features,) or None
    cond_inputs:  (..., cond_in_features) or None
    cond_weight:  (out_features, cond_in_features), required iff cond_inputs given
    """
    if (cond_inputs is None) != (cond_weight is None):
        raise ValueError("cond_inputs and cond_weight must be provided together")
    has_cond = cond_inputs is not None

    lead_shape = inputs.shape[:-1]
    Kw = inputs.shape[-1]
    N = weight.shape[0]

    compute_dtype = jnp.promote_types(inputs.dtype, weight.dtype)
    out_dtype = inputs.dtype

    x = inputs.reshape(-1, Kw).astype(compute_dtype)
    w = weight.astype(compute_dtype)
    b = (bias if bias is not None
         else jnp.zeros((N,), compute_dtype)).astype(jnp.float32)
    if has_cond:
        Kc = cond_inputs.shape[-1]
        cx = cond_inputs.reshape(-1, Kc).astype(compute_dtype)
        cw = cond_weight.astype(compute_dtype)
    else:
        Kc = 0
        cx = cw = None

    M = x.shape[0]
    it = jnp.dtype(compute_dtype).itemsize
    mit = jnp.dtype(mask.dtype).itemsize
    total_bytes = (_padded_bytes(M, Kw, it) + _padded_bytes(N, Kw, it)
                   + _padded_bytes(N, Kw, mit) + _padded_bytes(M, N, it))
    if has_cond:
        total_bytes += _padded_bytes(M, Kc, it) + _padded_bytes(N, Kc, it)

    if total_bytes <= _SMALL_PATH_MAX_BYTES:
        out = _small_masked_linear(x, w, mask, b, cx, cw, out_dtype)
    else:
        out = _tiled_masked_linear(x, w, mask, b, cx, cw, out_dtype)

    return out.reshape(lead_shape + (N,))


def _made_mask(in_features, out_features):
    # Deterministic MADE-style autoregressive (binary) mask.
    in_deg = np.arange(in_features) % in_features
    out_deg = np.arange(out_features) % in_features
    return jnp.asarray((out_deg[:, None] >= in_deg[None, :]).astype(np.float32))


if __name__ == "__main__":
    root = jax.random.PRNGKey(0)

    def make_case(key, batch, in_f, out_f, cond_f):
        k1, k2, k3, k4, k5 = jax.random.split(key, 5)
        x = jax.random.normal(k1, (batch, in_f), dtype=jnp.float32)
        bound = 1.0 / np.sqrt(in_f)
        w = jax.random.uniform(k2, (out_f, in_f), minval=-bound, maxval=bound,
                               dtype=jnp.float32)
        b = jax.random.uniform(k3, (out_f,), minval=-bound, maxval=bound,
                               dtype=jnp.float32)
        mask = _made_mask(in_f, out_f)
        if cond_f:
            cbound = 1.0 / np.sqrt(cond_f)
            cx = jax.random.normal(k4, (batch, cond_f), dtype=jnp.float32)
            cw = jax.random.uniform(k5, (out_f, cond_f), minval=-cbound,
                                    maxval=cbound, dtype=jnp.float32)
        else:
            cx = cw = None
        return x, w, mask, b, cx, cw

    def reference(x, w, mask, b, cx, cw):
        out = jnp.dot(x, (w * mask).T, precision=lax.Precision.HIGHEST) + b[None, :]
        if cx is not None:
            out = out + jnp.dot(cx, cw.T, precision=lax.Precision.HIGHEST)
        return out

    cases = [
        (8, 32, 32, 16),      # demo shapes: small single-shot fused path, with cond
        (8, 32, 32, 0),       # small path, no conditional input
        (64, 512, 640, 32),   # tiled path: mask fused in-kernel, cond fused into K grid
        (1024, 256, 256, 0),  # tiled path with >=4 batch tiles -> mask prepass kernel
    ]
    key = root
    for (batch, in_f, out_f, cond_f) in cases:
        key, sub = jax.random.split(key)
        x, w, mask, b, cx, cw = make_case(sub, batch, in_f, out_f, cond_f)
        out = jax.block_until_ready(masked_linear(x, w, mask, b, cx, cw))
        ref = reference(x, w, mask, b, cx, cw)
        np.testing.assert_allclose(np.asarray(out), np.asarray(ref),
                                   rtol=5e-5, atol=5e-5)

    print("KERNEL_OK")
</pallas_src>

<mosaic_0001>
module attributes {stable_mosaic.version = 11 : i64} {
  func.func @_small_kernel_cond(%arg0: memref<8x32xf32, #tpu.memory_space<vmem>>, %arg1: memref<32x32xf32, #tpu.memory_space<vmem>>, %arg2: memref<32x32xf32, #tpu.memory_space<vmem>>, %arg3: memref<1x32xf32, #tpu.memory_space<vmem>>, %arg4: memref<8x16xf32, #tpu.memory_space<vmem>>, %arg5: memref<32x16xf32, #tpu.memory_space<vmem>>, %arg6: memref<8x32xf32, #tpu.memory_space<vmem>>) attributes {dimension_semantics = [], scalar_prefetch = 0 : i64, scratch_operands = 0 : i64, tpu.core_type = #tpu.core_type<tc>} {
    %c0 = arith.constant 0 : index
    %c0_0 = arith.constant 0 : index
    %0 = vector.load %arg1[%c0, %c0_0] : memref<32x32xf32, #tpu.memory_space<vmem>>, vector<32x32xf32>
    %c0_1 = arith.constant 0 : index
    %c0_2 = arith.constant 0 : index
    %1 = vector.load %arg2[%c0_1, %c0_2] : memref<32x32xf32, #tpu.memory_space<vmem>>, vector<32x32xf32>
    %2 = arith.mulf %0, %1 : vector<32x32xf32>
    %c0_3 = arith.constant 0 : index
    %c0_4 = arith.constant 0 : index
    %3 = vector.load %arg0[%c0_3, %c0_4] : memref<8x32xf32, #tpu.memory_space<vmem>>, vector<8x32xf32>
    %cst = arith.constant dense<0.000000e+00> : vector<8x32xf32>
    %4 = tpu.matmul %3, %2, %cst {dimension_numbers = #tpu.dot_dimension_numbers<[1], [1], [0], [0], [0, 0, 1, 0], [], []>} : vector<8x32xf32>, vector<32x32xf32>, vector<8x32xf32> -> vector<8x32xf32>
    %c0_5 = arith.constant 0 : index
    %c0_6 = arith.constant 0 : index
    %5 = vector.load %arg4[%c0_5, %c0_6] : memref<8x16xf32, #tpu.memory_space<vmem>>, vector<8x16xf32>
    %c0_7 = arith.constant 0 : index
    %c0_8 = arith.constant 0 : index
    %6 = vector.load %arg5[%c0_7, %c0_8] : memref<32x16xf32, #tpu.memory_space<vmem>>, vector<32x16xf32>
    %cst_9 = arith.constant dense<0.000000e+00> : vector<8x32xf32>
    %7 = tpu.matmul %5, %6, %cst_9 {dimension_numbers = #tpu.dot_dimension_numbers<[1], [1], [0], [0], [0, 0, 1, 0], [], []>} : vector<8x16xf32>, vector<32x16xf32>, vector<8x32xf32> -> vector<8x32xf32>
    %8 = arith.addf %4, %7 : vector<8x32xf32>
    %c0_10 = arith.constant 0 : index
    %c0_11 = arith.constant 0 : index
    %9 = vector.load %arg3[%c0_10, %c0_11] : memref<1x32xf32, #tpu.memory_space<vmem>>, vector<1x32xf32>
    %10 = vector.broadcast %9 : vector<1x32xf32> to vector<8x32xf32>
    %11 = arith.addf %8, %10 : vector<8x32xf32>
    %c0_12 = arith.constant 0 : index
    %c0_13 = arith.constant 0 : index
    %12 = vector.load %arg6[%c0_12, %c0_13] : memref<8x32xf32, #tpu.memory_space<vmem>>, vector<8x32xf32>
    tpu.vector_store %arg6[%c0_12, %c0_13], %11 {strides = array<i32>} : memref<8x32xf32, #tpu.memory_space<vmem>>, vector<8x32xf32>,
    return
  }
}

</mosaic_0001>

<llo_original>
// kernel: tpu_custom_call.1
$region0: #{tpu_custom_call.1}
  #allocation0 [shape = 'u32[]', space=smem, size = 0x4, offset = 0x4, fixed_abs, tag = 'smem constant byte address 0x4 - core index']
  #allocation1 [shape = 'u32[72,128]{1,0:T(1,128)}', space=vmem, size = 0x9000, scoped, tag = 'internal scratch']
  %s0 = inlined_call_operand.vmem [shape: f32[8,32], index: 0, kind: input, shape index: {}]
  %s1 = inlined_call_operand.vmem [shape: f32[32,32], index: 1, kind: input, shape index: {}]
  %s2 = inlined_call_operand.hbm [shape: f32[32,32], index: 2, kind: input, shape index: {}]
  %s3 = inlined_call_operand.vmem [shape: f32[1,32], index: 3, kind: input, shape index: {}]
  %s4 = inlined_call_operand.vmem [shape: f32[8,16], index: 4, kind: input, shape index: {}]
  %s5 = inlined_call_operand.vmem [shape: f32[32,16], index: 5, kind: input, shape index: {}]
  %s6 = inlined_call_operand.hbm [shape: f32[8,32], index: 6, kind: output, shape index: {}]
  %s7 = sld [smem:[#allocation0]]
  $region38: #{tpu_custom_call.1} parent=0
    _
  %s9 = ssub.s32 1, %s7
  %s10 = scalar_select 0, %s9, %s7
  $region1: #{tpu_custom_call.1} parent=0
    #allocation2 [shape = 'u8[16384]{0}', space=vmem, size = 0x4000, scoped, tag = 'input window, operand 2, single buffered']
    #allocation3 [shape = 's32[1]{0}', space=sflag, size = 0x4, scoped, tag = 'scoped memory for tpu_custom_call.1']
    #allocation4 [shape = 's32[1]{0}', space=sflag, size = 0x4, scoped, tag = 'scoped memory for tpu_custom_call.1']
    #allocation5 [shape = 'u8[4096]{0}', space=vmem, size = 0x1000, scoped, tag = 'output window, operand 0, single buffered']
    %11 = vsyncpa [#allocation3], 0
    %12 = vsyncpa [#allocation4], 0
    // Predicated region
    $region2: #{tpu_custom_call.1} parent=1 // pred_check
      _
    $region3: #{tpu_custom_call.1} parent=1 // pred_check_branch
      %14 = sbr.rel (0) target = $region5
    $region4: #{tpu_custom_call.1} parent=1 // pred_region
      _
    $region5: #{tpu_custom_call.1} parent=1 // pred_fallthru
      _
    // Predicated region
    $region6: #{tpu_custom_call.1} parent=1 // pred_check
      _
    $region7: #{tpu_custom_call.1} parent=1 // pred_check_branch
      %16 = sbr.rel (0) target = $region9
    $region8: #{tpu_custom_call.1} parent=1 // pred_region
      _
    $region9: #{tpu_custom_call.1} parent=1 // pred_fallthru
      _
    // Predicated region
    $region10: #{tpu_custom_call.1} parent=1 // pred_check
      _
    $region11: #{tpu_custom_call.1} parent=1 // pred_check_branch
      %18 = sbr.rel (0) target = $region13
    $region12: #{tpu_custom_call.1} parent=1 // pred_region
      %20 = vsyncadd [#allocation3], 0
      %s21 = sshll.u32 %s2, 4
      %s22 = int_to_ptr.hbm [resolvable:$true] %s21
      %s23 = sshll.u32 [#allocation2], 4
      %s24 = int_to_ptr.vmem [resolvable:$true] %s23
      %29 = dma.hbm_to_vmem [thread:$0]  %s22, 512, %s24, [#allocation3], 128, 128, 8
    $region13: #{tpu_custom_call.1} parent=1 // pred_fallthru
      _
    // Predicated region
    $region14: #{tpu_custom_call.1} parent=1 // pred_check
      _
    $region15: #{tpu_custom_call.1} parent=1 // pred_check_branch
      %31 = sbr.rel (0) target = $region17
    $region16: #{tpu_custom_call.1} parent=1 // pred_region
      _
    $region17: #{tpu_custom_call.1} parent=1 // pred_fallthru
      _
    // Predicated region
    $region18: #{tpu_custom_call.1} parent=1 // pred_check
      _
    $region19: #{tpu_custom_call.1} parent=1 // pred_check_branch
      %33 = sbr.rel (0) target = $region21
    $region20: #{tpu_custom_call.1} parent=1 // pred_region
      _
    $region21: #{tpu_custom_call.1} parent=1 // pred_fallthru
      _
    // Predicated region
    $region22: #{tpu_custom_call.1} parent=1 // pred_check
      _
    $region23: #{tpu_custom_call.1} parent=1 // pred_check_branch
      %35 = sbr.rel (0) target = $region25
    $region24: #{tpu_custom_call.1} parent=1 // pred_region
      _
    $region25: #{tpu_custom_call.1} parent=1 // pred_fallthru
      _
    // Predicated region
    $region26: #{tpu_custom_call.1} parent=1 // pred_check
      _
    $region27: #{tpu_custom_call.1} parent=1 // pred_check_branch
      %37 = sbr.rel (0) target = $region29
    $region28: #{tpu_custom_call.1} parent=1 // pred_region
      %39 = dma.done [#allocation3], 512
    $region29: #{tpu_custom_call.1} parent=1 // pred_fallthru
      _
    %v40 = vld [vmem:[%s1] sm:$0xff]
    %v41 = vld [vmem:[%s1 + $0x8] sm:$0xff]
    %v42 = vld [vmem:[%s1 + $0x10] sm:$0xff]
    %v43 = vld [vmem:[%s1 + $0x18] sm:$0xff]
    %v44 = vld [vmem:[#allocation2] sm:$0xff]
    %v45 = vld [vmem:[#allocation2 + $0x8] sm:$0xff]
    %v46 = vld [vmem:[#allocation2 + $0x10] sm:$0xff]
    %v47 = vld [vmem:[#allocation2 + $0x18] sm:$0xff]
    %v48 = vmul.f32 %v40, %v44
    %v49 = vmul.f32 %v41, %v45
    %v50 = vmul.f32 %v42, %v46
    %v51 = vmul.f32 %v43, %v47
    %v52 = vld [vmem:[%s0] sm:$0xff]
    %v53 = vld [vmem:[%s4] sm:$0xff]
    %v54 = vld [vmem:[%s5] sm:$0xff]
    %v55 = vld [vmem:[%s5 + $0x8] sm:$0xff]
    %v56 = vld [vmem:[%s5 + $0x10] sm:$0xff]
    %v57 = vld [vmem:[%s5 + $0x18] sm:$0xff]
    %vm58 = vcmask 130048
    %v60 = vsel %vm58, %v53, 0
    %v63 = vsel %vm58, %v54, 0
    %v66 = vsel %vm58, %v55, 0
    %v69 = vsel %vm58, %v56, 0
    %v72 = vsel %vm58, %v57, 0
    %74 = vmatpush.xpose.msra.mxu0 0.0
    %75 = vmatpush.xpose.msra.mxu0 0.0
    %76 = vmatpush.xpose.msra.mxu0 0.0
    %77 = vmatpush.xpose.msra.mxu0 0.0
    %78 = vmatpush.xpose.msra.mxu0 0.0
    %79 = vmatpush.xpose.msra.mxu0 0.0
    %80 = vmatpush.xpose.msra.mxu0 0.0
    %81 = vmatpush.xpose.msra.mxu0 0.0
    %82 = vmatpush.xpose.msra.mxu0 0.0
    %83 = vmatpush.xpose.msra.mxu0 0.0
    %84 = vmatpush.xpose.msra.mxu0 0.0
    %85 = vmatpush.xpose.msra.mxu0 0.0
    %86 = vmatpush.xpose.msra.mxu0 %v72
    %87 = vmatpush.xpose.msra.mxu0 %v69
    %88 = vmatpush.xpose.msra.mxu0 %v66
    %89 = vmatpush.xpose.msra.mxu0 %v63
    %90 = vmatmul.f32.gmra.mxu0 %v60
    %v91 = vpop.f32.mrf.mxu0
    %v92 = vadd.f32 0.0, %v91
    %93 = vdwg.mxu0
    %vm94 = vcmask 261120
    %v96 = vsel %vm94, %v52, 0
    %v99 = vsel %vm94, %v48, 0
    %v102 = vsel %vm94, %v49, 0
    %v105 = vsel %vm94, %v50, 0
    %v108 = vsel %vm94, %v51, 0
    %110 = vmatpush.xpose.msra.mxu0 0.0
    %111 = vmatpush.xpose.msra.mxu0 0.0
    %112 = vmatpush.xpose.msra.mxu0 0.0
    %113 = vmatpush.xpose.msra.mxu0 0.0
    %114 = vmatpush.xpose.msra.mxu0 0.0
    %115 = vmatpush.xpose.msra.mxu0 0.0
    %116 = vmatpush.xpose.msra.mxu0 0.0
    %117 = vmatpush.xpose.msra.mxu0 0.0
    %118 = vmatpush.xpose.msra.mxu0 0.0
    %119 = vmatpush.xpose.msra.mxu0 0.0
    %120 = vmatpush.xpose.msra.mxu0 0.0
    %121 = vmatpush.xpose.msra.mxu0 0.0
    %122 = vmatpush.xpose.msra.mxu0 %v108
    %123 = vmatpush.xpose.msra.mxu0 %v105
    %124 = vmatpush.xpose.msra.mxu0 %v102
    %125 = vmatpush.xpose.msra.mxu0 %v99
    %126 = vmatmul.f32.gmra.mxu0 %v96
    %v127 = vpop.f32.mrf.mxu0
    %v128 = vadd.f32 %v92, %v127
    %129 = vdwg.mxu0
    %v130 = vld [vmem:[%s3] sm:$0x1]
    %v132 = vperm.slane %v130, 0
    %v134 = vadd.f32 %v128, %v132
    %135 = vst.msk [vmem:[#allocation5] sm:$0xff] %vm94, %v134
    // Predicated region
    $region30: #{tpu_custom_call.1} parent=1 // pred_check
      _
    $region31: #{tpu_custom_call.1} parent=1 // pred_check_branch
      %137 = sbr.rel (0) target = $region33
    $region32: #{tpu_custom_call.1} parent=1 // pred_region
      %139 = vsyncadd [#allocation4], 0
      %s141 = sshll.u32 [#allocation5], 4
      %s142 = int_to_ptr.vmem [resolvable:$true] %s141
      %s143 = sshll.u32 %s6, 4
      %s144 = int_to_ptr.hbm [resolvable:$true] %s143
      %146 = dma.vmem_to_hbm [thread:$0]  %s142, 128, %s144, [#allocation4]
    $region33: #{tpu_custom_call.1} parent=1 // pred_fallthru
      _
    // Predicated region
    $region34: #{tpu_custom_call.1} parent=1 // pred_check
      _
    $region35: #{tpu_custom_call.1} parent=1 // pred_check_branch
      %148 = sbr.rel (0) target = $region37
    $region36: #{tpu_custom_call.1} parent=1 // pred_region
      %150 = dma.done [#allocation4], 128
    $region37: #{tpu_custom_call.1} parent=1 // pred_fallthru
      _
    %151 = vsyncpa [#allocation3], 1
    %152 = vsyncpa [#allocation4], 1

</llo_original>
